<compile_context>
chip_gen: v5e
topology: v5e:2x2
jax: 0.10.0
libtpu: 0.0.40
codegen_flags: <defaults>
</compile_context>

<pallas_src>
import functools

import jax
import jax.numpy as jnp
from jax.experimental import pallas as pl
from jax.experimental.pallas import tpu as pltpu

LANE = 128      # lane width: hidden/output feature dims padded to multiples of this
SUBLANE = 8     # sublane width: batch tiles kept as multiples of this


def _round_up(x: int, m: int) -> int:
    return ((x + m - 1) // m) * m


def _cdiv(a: int, b: int) -> int:
    return -(-a // b)


# ----------------------------------------------------------------------------
# Fused MLP kernel: one batch tile, all layers chained in-kernel.
# ----------------------------------------------------------------------------
def _fused_mlp_kernel(*refs, n_layers: int, activations: dict):
    # refs = (x_ref, w0, b0, w1, b1, ..., w{n-1}, b{n-1}, o_ref)
    x_ref = refs[0]
    o_ref = refs[-1]
    h = x_ref[...].astype(jnp.float32)
    for i in range(n_layers):
        w = refs[1 + 2 * i][...]                     # resident bf16 weight
        b = refs[2 + 2 * i][...].astype(jnp.float32)  # (1, pout) f32 bias
        # bf16 x bf16 -> f32 accumulate on the MXU; everything else stays f32.
        h = jnp.dot(h.astype(jnp.bfloat16), w, preferred_element_type=jnp.float32)
        h = h + b                                    # bias broadcast over rows
        if i < n_layers - 1:                         # activation after all but last
            act = activations.get(i)
            h = act(h) if act is not None else jnp.maximum(h, 0.0)
    o_ref[...] = h.astype(o_ref.dtype)


def _resident_spec(shape):
    """Full-array block, constant index_map -> stays resident across batch tiles."""
    idx = lambda i: (0, 0)
    if hasattr(pl, "Buffered"):
        try:
            # Constant index_map: a single buffer is enough (no re-DMA per step).
            return pl.BlockSpec(shape, idx, pipeline_mode=pl.Buffered(1))
        except TypeError:
            pass
    return pl.BlockSpec(shape, idx)


def _vmem_capacity_bytes() -> int:
    try:
        return int(pltpu.get_tpu_info().vmem_capacity_bytes)
    except Exception:
        return 64 << 20   # conservative: v7x per-TensorCore VMEM


def _vmem_limit_bytes(tb: int, fin: int, pout: int, params) -> int:
    f32 = 4
    # Resident (single-buffered) weights + biases.
    w_bytes = sum(
        w.size * jnp.dtype(w.dtype).itemsize + b.size * jnp.dtype(b.dtype).itemsize
        for w, b in params
    )
    max_pd = max([fin] + [w.shape[1] for w, _ in params])
    stream = 2 * tb * fin * f32 + 2 * tb * pout * f32   # double-buffered x / out tiles
    live = 2 * tb * max_pd * f32                         # live h + dot result (f32)
    est = w_bytes + stream + live
    cap = _vmem_capacity_bytes()
    # TODO(synk): if est exceeds ~0.9*cap (very large layers), switch to a
    # per-layer / K-tiled emit_pipeline design that streams weights instead of
    # keeping all layers resident.
    return int(min(max(est * 3 // 2, 32 << 20), cap * 9 // 10))


def _fused_mlp_call(x_p, params, activations, tb):
    """Single pallas_call over a batch grid. x_p batch is a multiple of tb."""
    bp, fin = x_p.shape
    n_layers = len(params)
    pout = params[-1][0].shape[1]
    n_blocks = bp // tb

    in_specs = [pl.BlockSpec((tb, fin), lambda i: (i, 0))]
    flat_params = []
    for w, b in params:
        in_specs.append(_resident_spec(w.shape))
        in_specs.append(_resident_spec(b.shape))
        flat_params += [w, b]
    out_specs = pl.BlockSpec((tb, pout), lambda i: (i, 0))

    flops = 2 * sum(bp * w.shape[0] * w.shape[1] for w, _ in params)
    bytes_accessed = (
        x_p.size * jnp.dtype(x_p.dtype).itemsize
        + sum(w.size * jnp.dtype(w.dtype).itemsize
              + b.size * jnp.dtype(b.dtype).itemsize for w, b in params)
        + bp * pout * jnp.dtype(x_p.dtype).itemsize
    )

    kernel = functools.partial(
        _fused_mlp_kernel, n_layers=n_layers, activations=activations
    )
    return pl.pallas_call(
        kernel,
        out_shape=jax.ShapeDtypeStruct((bp, pout), jnp.float32),
        grid_spec=pltpu.PrefetchScalarGridSpec(
            num_scalar_prefetch=0,
            grid=(n_blocks,),
            in_specs=in_specs,
            out_specs=out_specs,
        ),
        compiler_params=pltpu.CompilerParams(
            dimension_semantics=("parallel",),   # batch axis -> both TCs on v7x
            vmem_limit_bytes=_vmem_limit_bytes(tb, fin, pout, params),
        ),
        cost_estimate=pl.CostEstimate(
            flops=flops, transcendentals=0, bytes_accessed=bytes_accessed
        ),
    )(x_p, *flat_params)


# ----------------------------------------------------------------------------
# NeuralNetwork equivalent (MLP: Linear layers, activation between all but last)
# ----------------------------------------------------------------------------
class NeuralNetworkPallas:
    """Mirror of the PyTorch NeuralNetwork(*layers, activations=...) module.

    For layer sizes (l0, l1, ..., lN) it builds N Linear layers; an activation
    (default ReLU, or a user-supplied jnp-compatible *elementwise* callable per
    layer index) follows every Linear except the last. The full forward pass
    runs as a single fused Pallas kernel: bf16 MXU matmuls, f32 accumulation,
    lane-dense (128-padded) hidden/output dims, weights resident in VMEM.
    """

    def __init__(self, *layers, activations=None, key=None):
        assert len(layers) >= 2
        if key is None:
            key = jax.random.PRNGKey(0)
        self.dims = list(layers)                                   # logical sizes
        # Input feature dim stays unpadded (full-dim block is legal); hidden and
        # output dims are padded to 128 lanes once at init.
        self.pdims = [layers[0]] + [_round_up(d, LANE) for d in layers[1:]]
        self.activations = dict(activations) if activations else {}
        self.params = []  # (w: bf16 [pin, pout], b: f32 [1, pout]), zero-padded
        for i in range(len(layers) - 1):
            fan_in, fan_out = layers[i], layers[i + 1]
            pin, pout = self.pdims[i], self.pdims[i + 1]
            key, wk, bk = jax.random.split(key, 3)
            # PyTorch default init: U(-1/sqrt(fan_in), 1/sqrt(fan_in))
            bound = 1.0 / (fan_in ** 0.5)
            w = jax.random.uniform(
                wk, (fan_in, fan_out), dtype=jnp.float32, minval=-bound, maxval=bound
            )
            b = jax.random.uniform(
                bk, (fan_out,), dtype=jnp.float32, minval=-bound, maxval=bound
            )
            # Zero-pad once at init; padded rows/cols never touch real outputs.
            w_p = (
                jnp.zeros((pin, pout), jnp.float32).at[:fan_in, :fan_out].set(w)
            ).astype(jnp.bfloat16)
            b_p = jnp.zeros((1, pout), jnp.float32).at[0, :fan_out].set(b)
            self.params.append((w_p, b_p))

    @staticmethod
    def _pick_batch_tile(B: int, max_tile: int = 1024) -> int:
        n_blocks = max(1, _cdiv(B, max_tile))
        if B >= 512:
            n_blocks = max(n_blocks, 2)   # keep both v7x TensorCores busy
        return _round_up(_cdiv(B, n_blocks), SUBLANE)

    def forward(self, x):
        B, fin = x.shape
        assert fin == self.dims[0]
        tb = self._pick_batch_tile(B)
        bp = _round_up(B, tb)
        x = x.astype(jnp.float32)
        if bp != B:
            # Only the ragged batch remainder is padded; feature dim is unpadded,
            # so an aligned batch passes straight through with no host-side copy.
            x_p = jnp.zeros((bp, fin), jnp.float32).at[:B].set(x)
        else:
            x_p = x
        out_p = _fused_mlp_call(x_p, self.params, self.activations, tb)
        # TODO(synk): skip this slice when the consumer accepts the lane-padded output.
        return out_p[:B, : self.dims[-1]]

    __call__ = forward

    # TODO(synk): train_model (Adam + CrossEntropyLoss training loop) is host-side
    # training logic, not a forward-pass kernel; not translated to Pallas.

    # Plain-JAX mirror of the kernel math (bf16 MXU operands, f32 accumulation)
    # over the same padded parameters, for correctness testing.
    def reference(self, x):
        h = x.astype(jnp.float32)
        n = len(self.params)
        for i, (w, b) in enumerate(self.params):
            h = jnp.dot(h.astype(jnp.bfloat16), w,
                        preferred_element_type=jnp.float32) + b
            if i < n - 1:
                act = self.activations.get(i)
                h = act(h) if act is not None else jnp.maximum(h, 0.0)
        return h[:, : self.dims[-1]]


if __name__ == "__main__":
    # Small MLP: 32 -> 64 -> 64 -> 16
    net = NeuralNetworkPallas(32, 64, 64, 16, key=jax.random.PRNGKey(0))

    # Case 1: batch = 8 (tile-aligned -> no host-side padding copy)
    x = jax.random.normal(jax.random.PRNGKey(0), (8, 32), dtype=jnp.float32)
    out = jax.block_until_ready(net(x))
    assert out.shape == (8, 16)
    ref = net.reference(x)
    assert jnp.allclose(out, ref, atol=5e-3, rtol=5e-3)

    # Case 2: batch = 5 (exercises batch padding / slicing path)
    x2 = jax.random.normal(jax.random.PRNGKey(1), (5, 32), dtype=jnp.float32)
    out2 = jax.block_until_ready(net(x2))
    assert out2.shape == (5, 16)
    ref2 = net.reference(x2)
    assert jnp.allclose(out2, ref2, atol=5e-3, rtol=5e-3)

    print("KERNEL_OK")
</pallas_src>

<mosaic_0001>
module attributes {stable_mosaic.version = 11 : i64} {
  func.func @_fused_mlp_kernel(%arg0: i32, %arg1: memref<8x32xf32, #tpu.memory_space<vmem>>, %arg2: memref<32x128xbf16, #tpu.memory_space<vmem>>, %arg3: memref<1x128xf32, #tpu.memory_space<vmem>>, %arg4: memref<128x128xbf16, #tpu.memory_space<vmem>>, %arg5: memref<1x128xf32, #tpu.memory_space<vmem>>, %arg6: memref<128x128xbf16, #tpu.memory_space<vmem>>, %arg7: memref<1x128xf32, #tpu.memory_space<vmem>>, %arg8: memref<8x128xf32, #tpu.memory_space<vmem>>) attributes {dimension_semantics = [#tpu.dimension_semantics<parallel>], iteration_bounds = array<i64: 1>, scalar_prefetch = 0 : i64, scratch_operands = 0 : i64, tpu.core_type = #tpu.core_type<tc>, window_params = [{transform_indices = @transform_0, window_bounds = array<i64: 8, 32>}, {pipeline_mode = #tpu.pipeline_mode<synchronous>, transform_indices = @transform_1, window_bounds = array<i64: 32, 128>}, {pipeline_mode = #tpu.pipeline_mode<synchronous>, transform_indices = @transform_2, window_bounds = array<i64: 1, 128>}, {pipeline_mode = #tpu.pipeline_mode<synchronous>, transform_indices = @transform_3, window_bounds = array<i64: 128, 128>}, {pipeline_mode = #tpu.pipeline_mode<synchronous>, transform_indices = @transform_4, window_bounds = array<i64: 1, 128>}, {pipeline_mode = #tpu.pipeline_mode<synchronous>, transform_indices = @transform_5, window_bounds = array<i64: 128, 128>}, {pipeline_mode = #tpu.pipeline_mode<synchronous>, transform_indices = @transform_6, window_bounds = array<i64: 1, 128>}, {transform_indices = @transform_7, window_bounds = array<i64: 8, 128>}]} {
    %c0 = arith.constant 0 : index
    %c0_0 = arith.constant 0 : index
    %0 = vector.load %arg1[%c0, %c0_0] : memref<8x32xf32, #tpu.memory_space<vmem>>, vector<8x32xf32>
    %c0_1 = arith.constant 0 : index
    %c0_2 = arith.constant 0 : index
    %1 = vector.load %arg2[%c0_1, %c0_2] : memref<32x128xbf16, #tpu.memory_space<vmem>>, vector<32x128xbf16>
    %c0_3 = arith.constant 0 : index
    %c0_4 = arith.constant 0 : index
    %2 = vector.load %arg3[%c0_3, %c0_4] : memref<1x128xf32, #tpu.memory_space<vmem>>, vector<1x128xf32>
    %3 = arith.truncf %0 : vector<8x32xf32> to vector<8x32xbf16>
    %cst = arith.constant dense<0.000000e+00> : vector<8x128xf32>
    %4 = tpu.matmul %3, %1, %cst {dimension_numbers = #tpu.dot_dimension_numbers<[1], [0], [0], [1], [0, 0, 1, 1], [], []>} : vector<8x32xbf16>, vector<32x128xbf16>, vector<8x128xf32> -> vector<8x128xf32>
    %5 = vector.broadcast %2 : vector<1x128xf32> to vector<8x128xf32>
    %6 = arith.addf %4, %5 : vector<8x128xf32>
    %cst_5 = arith.constant 0.000000e+00 : f32
    %7 = vector.broadcast %cst_5 : f32 to vector<8x128xf32>
    %8 = arith.maximumf %6, %7 : vector<8x128xf32>
    %c0_6 = arith.constant 0 : index
    %c0_7 = arith.constant 0 : index
    %9 = vector.load %arg4[%c0_6, %c0_7] : memref<128x128xbf16, #tpu.memory_space<vmem>>, vector<128x128xbf16>
    %c0_8 = arith.constant 0 : index
    %c0_9 = arith.constant 0 : index
    %10 = vector.load %arg5[%c0_8, %c0_9] : memref<1x128xf32, #tpu.memory_space<vmem>>, vector<1x128xf32>
    %11 = arith.truncf %8 : vector<8x128xf32> to vector<8x128xbf16>
    %cst_10 = arith.constant dense<0.000000e+00> : vector<8x128xf32>
    %12 = tpu.matmul %11, %9, %cst_10 {dimension_numbers = #tpu.dot_dimension_numbers<[1], [0], [0], [1], [0, 0, 1, 1], [], []>} : vector<8x128xbf16>, vector<128x128xbf16>, vector<8x128xf32> -> vector<8x128xf32>
    %13 = vector.broadcast %10 : vector<1x128xf32> to vector<8x128xf32>
    %14 = arith.addf %12, %13 : vector<8x128xf32>
    %cst_11 = arith.constant 0.000000e+00 : f32
    %15 = vector.broadcast %cst_11 : f32 to vector<8x128xf32>
    %16 = arith.maximumf %14, %15 : vector<8x128xf32>
    %c0_12 = arith.constant 0 : index
    %c0_13 = arith.constant 0 : index
    %17 = vector.load %arg6[%c0_12, %c0_13] : memref<128x128xbf16, #tpu.memory_space<vmem>>, vector<128x128xbf16>
    %c0_14 = arith.constant 0 : index
    %c0_15 = arith.constant 0 : index
    %18 = vector.load %arg7[%c0_14, %c0_15] : memref<1x128xf32, #tpu.memory_space<vmem>>, vector<1x128xf32>
    %19 = arith.truncf %16 : vector<8x128xf32> to vector<8x128xbf16>
    %cst_16 = arith.constant dense<0.000000e+00> : vector<8x128xf32>
    %20 = tpu.matmul %19, %17, %cst_16 {dimension_numbers = #tpu.dot_dimension_numbers<[1], [0], [0], [1], [0, 0, 1, 1], [], []>} : vector<8x128xbf16>, vector<128x128xbf16>, vector<8x128xf32> -> vector<8x128xf32>
    %21 = vector.broadcast %18 : vector<1x128xf32> to vector<8x128xf32>
    %22 = arith.addf %20, %21 : vector<8x128xf32>
    %c0_17 = arith.constant 0 : index
    %c0_18 = arith.constant 0 : index
    %23 = vector.load %arg8[%c0_17, %c0_18] : memref<8x128xf32, #tpu.memory_space<vmem>>, vector<8x128xf32>
    tpu.vector_store %arg8[%c0_17, %c0_18], %22 {strides = array<i32>} : memref<8x128xf32, #tpu.memory_space<vmem>>, vector<8x128xf32>,
    return
  }
  func.func @transform_0(%arg0: i32) -> (i32, i32) {
    %c0_i32 = arith.constant 0 : i32
    %c0_i32_0 = arith.constant 0 : i32
    return %arg0, %c0_i32 : i32, i32
  }
  func.func @transform_1(%arg0: i32) -> (i32, i32) {
    %c0_i32 = arith.constant 0 : i32
    %c0_i32_0 = arith.constant 0 : i32
    %c0_i32_1 = arith.constant 0 : i32
    return %c0_i32, %c0_i32_0 : i32, i32
  }
  func.func @transform_2(%arg0: i32) -> (i32, i32) {
    %c0_i32 = arith.constant 0 : i32
    %c0_i32_0 = arith.constant 0 : i32
    %c0_i32_1 = arith.constant 0 : i32
    return %c0_i32, %c0_i32_0 : i32, i32
  }
  func.func @transform_3(%arg0: i32) -> (i32, i32) {
    %c0_i32 = arith.constant 0 : i32
    %c0_i32_0 = arith.constant 0 : i32
    %c0_i32_1 = arith.constant 0 : i32
    return %c0_i32, %c0_i32_0 : i32, i32
  }
  func.func @transform_4(%arg0: i32) -> (i32, i32) {
    %c0_i32 = arith.constant 0 : i32
    %c0_i32_0 = arith.constant 0 : i32
    %c0_i32_1 = arith.constant 0 : i32
    return %c0_i32, %c0_i32_0 : i32, i32
  }
  func.func @transform_5(%arg0: i32) -> (i32, i32) {
    %c0_i32 = arith.constant 0 : i32
    %c0_i32_0 = arith.constant 0 : i32
    %c0_i32_1 = arith.constant 0 : i32
    return %c0_i32, %c0_i32_0 : i32, i32
  }
  func.func @transform_6(%arg0: i32) -> (i32, i32) {
    %c0_i32 = arith.constant 0 : i32
    %c0_i32_0 = arith.constant 0 : i32
    %c0_i32_1 = arith.constant 0 : i32
    return %c0_i32, %c0_i32_0 : i32, i32
  }
  func.func @transform_7(%arg0: i32) -> (i32, i32) {
    %c0_i32 = arith.constant 0 : i32
    %c0_i32_0 = arith.constant 0 : i32
    return %arg0, %c0_i32 : i32, i32
  }
}

</mosaic_0001>

<llo_original>
// kernel: tpu_custom_call.1
$region0: #{tpu_custom_call.1}
  #allocation0 [shape = 'u32[]', space=smem, size = 0x4, offset = 0x4, fixed_abs, tag = 'smem constant byte address 0x4 - core index']
  #allocation1 [shape = 'u32[72,128]{1,0:T(1,128)}', space=vmem, size = 0x9000, scoped, tag = 'internal scratch']
  %s0 = inlined_call_operand.hbm [shape: f32[8,32], index: 0, kind: input, shape index: {}]
  %s1 = inlined_call_operand.hbm [shape: bf16[32,128], index: 1, kind: input, shape index: {}]
  %s2 = inlined_call_operand.vmem [shape: f32[1,128], index: 2, kind: input, shape index: {}]
  %s3 = inlined_call_operand.hbm [shape: bf16[128,128], index: 3, kind: input, shape index: {}]
  %s4 = inlined_call_operand.vmem [shape: f32[1,128], index: 4, kind: input, shape index: {}]
  %s5 = inlined_call_operand.hbm [shape: bf16[128,128], index: 5, kind: input, shape index: {}]
  %s6 = inlined_call_operand.vmem [shape: f32[1,128], index: 6, kind: input, shape index: {}]
  %s7 = inlined_call_operand.hbm [shape: f32[8,128], index: 7, kind: output, shape index: {}]
  %s8 = sld [smem:[#allocation0]]
  $region54: #{tpu_custom_call.1} parent=0
    _
  %s10 = ssub.s32 1, %s8
  %s11 = scalar_select 0, %s10, %s8
  $region1: #{tpu_custom_call.1} parent=0
    #allocation2 [shape = 'u8[4096]{0}', space=vmem, size = 0x1000, scoped, tag = 'input window, operand 0, single buffered']
    #allocation3 [shape = 's32[1]{0}', space=sflag, size = 0x4, scoped, tag = 'scoped memory for tpu_custom_call.1']
    #allocation4 [shape = 's32[1]{0}', space=sflag, size = 0x4, scoped, tag = 'scoped memory for tpu_custom_call.1']
    #allocation5 [shape = 'u8[8192]{0}', space=vmem, size = 0x2000, scoped, tag = 'input window, operand 1, single buffered']
    #allocation6 [shape = 's32[1]{0}', space=sflag, size = 0x4, scoped, tag = 'scoped memory for tpu_custom_call.1']
    #allocation7 [shape = 'u8[32768]{0}', space=vmem, size = 0x8000, scoped, tag = 'input window, operand 3, single buffered']
    #allocation8 [shape = 'u8[32768]{0}', space=vmem, size = 0x8000, scoped, tag = 'input window, operand 5, single buffered']
    #allocation9 [shape = 's32[1]{0}', space=sflag, size = 0x4, scoped, tag = 'scoped memory for tpu_custom_call.1']
    #allocation10 [shape = 'u8[4096]{0}', space=vmem, size = 0x1000, scoped, tag = 'output window, operand 0, single buffered']
    %12 = vsyncpa [#allocation3], 0
    %13 = vsyncpa [#allocation6], 0
    %14 = vsyncpa [#allocation9], 0
    %15 = vsyncpa [#allocation4], 0
    // Predicated region
    $region2: #{tpu_custom_call.1} parent=1 // pred_check
      _
    $region3: #{tpu_custom_call.1} parent=1 // pred_check_branch
      %17 = sbr.rel (0) target = $region5
    $region4: #{tpu_custom_call.1} parent=1 // pred_region
      %19 = vsyncadd [#allocation3], 0
      %s21 = sshll.u32 %s0, 4
      %s22 = int_to_ptr.hbm [resolvable:$true] %s21
      %s23 = sshll.u32 [#allocation2], 4
      %s24 = int_to_ptr.vmem [resolvable:$true] %s23
      %26 = dma.hbm_to_vmem [thread:$0]  %s22, 128, %s24, [#allocation3]
    $region5: #{tpu_custom_call.1} parent=1 // pred_fallthru
      _
    // Predicated region
    $region6: #{tpu_custom_call.1} parent=1 // pred_check
      _
    $region7: #{tpu_custom_call.1} parent=1 // pred_check_branch
      %28 = sbr.rel (0) target = $region9
    $region8: #{tpu_custom_call.1} parent=1 // pred_region
      %30 = vsyncadd [#allocation6], 0
      %s31 = sshll.u32 %s1, 4
      %s32 = int_to_ptr.hbm [resolvable:$true] %s31
      %s33 = sshll.u32 [#allocation5], 4
      %s34 = int_to_ptr.vmem [resolvable:$true] %s33
      %39 = dma.hbm_to_vmem [thread:$0]  %s32, 256, %s34, [#allocation6], 64, 64, 4
    $region9: #{tpu_custom_call.1} parent=1 // pred_fallthru
      _
    // Predicated region
    $region10: #{tpu_custom_call.1} parent=1 // pred_check
      _
    $region11: #{tpu_custom_call.1} parent=1 // pred_check_branch
      %41 = sbr.rel (0) target = $region13
    $region12: #{tpu_custom_call.1} parent=1 // pred_region
      _
    $region13: #{tpu_custom_call.1} parent=1 // pred_fallthru
      _
    // Predicated region
    $region14: #{tpu_custom_call.1} parent=1 // pred_check
      _
    $region15: #{tpu_custom_call.1} parent=1 // pred_check_branch
      %43 = sbr.rel (0) target = $region17
    $region16: #{tpu_custom_call.1} parent=1 // pred_region
      %45 = vsyncadd [#allocation6], 0
      %s46 = sshll.u32 %s3, 4
      %s47 = int_to_ptr.hbm [resolvable:$true] %s46
      %s48 = sshll.u32 [#allocation7], 4
      %s49 = int_to_ptr.vmem [resolvable:$true] %s48
      %54 = dma.hbm_to_vmem [thread:$0]  %s47, 1024, %s49, [#allocation6], 64, 64, 4
    $region17: #{tpu_custom_call.1} parent=1 // pred_fallthru
      _
    // Predicated region
    $region18: #{tpu_custom_call.1} parent=1 // pred_check
      _
    $region19: #{tpu_custom_call.1} parent=1 // pred_check_branch
      %56 = sbr.rel (0) target = $region21
    $region20: #{tpu_custom_call.1} parent=1 // pred_region
      _
    $region21: #{tpu_custom_call.1} parent=1 // pred_fallthru
      _
    // Predicated region
    $region22: #{tpu_custom_call.1} parent=1 // pred_check
      _
    $region23: #{tpu_custom_call.1} parent=1 // pred_check_branch
      %58 = sbr.rel (0) target = $region25
    $region24: #{tpu_custom_call.1} parent=1 // pred_region
      %60 = vsyncadd [#allocation9], 0
      %s61 = sshll.u32 %s5, 4
      %s62 = int_to_ptr.hbm [resolvable:$true] %s61
      %s63 = sshll.u32 [#allocation8], 4
      %s64 = int_to_ptr.vmem [resolvable:$true] %s63
      %69 = dma.hbm_to_vmem [thread:$0]  %s62, 1024, %s64, [#allocation9], 64, 64, 4
    $region25: #{tpu_custom_call.1} parent=1 // pred_fallthru
      _
    // Predicated region
    $region26: #{tpu_custom_call.1} parent=1 // pred_check
      _
    $region27: #{tpu_custom_call.1} parent=1 // pred_check_branch
      %71 = sbr.rel (0) target = $region29
    $region28: #{tpu_custom_call.1} parent=1 // pred_region
      _
    $region29: #{tpu_custom_call.1} parent=1 // pred_fallthru
      _
    // Predicated region
    $region30: #{tpu_custom_call.1} parent=1 // pred_check
      _
    $region31: #{tpu_custom_call.1} parent=1 // pred_check_branch
      %73 = sbr.rel (0) target = $region33
    $region32: #{tpu_custom_call.1} parent=1 // pred_region
      %75 = dma.done [#allocation3], 128
    $region33: #{tpu_custom_call.1} parent=1 // pred_fallthru
      _
    // Predicated region
    $region34: #{tpu_custom_call.1} parent=1 // pred_check
      _
    $region35: #{tpu_custom_call.1} parent=1 // pred_check_branch
      %77 = sbr.rel (0) target = $region37
    $region36: #{tpu_custom_call.1} parent=1 // pred_region
      %79 = dma.done [#allocation6], 256
    $region37: #{tpu_custom_call.1} parent=1 // pred_fallthru
      _
    // Predicated region
    $region38: #{tpu_custom_call.1} parent=1 // pred_check
      _
    $region39: #{tpu_custom_call.1} parent=1 // pred_check_branch
      %81 = sbr.rel (0) target = $region41
    $region40: #{tpu_custom_call.1} parent=1 // pred_region
      %83 = dma.done [#allocation6], 1024
    $region41: #{tpu_custom_call.1} parent=1 // pred_fallthru
      _
    // Predicated region
    $region42: #{tpu_custom_call.1} parent=1 // pred_check
      _
    $region43: #{tpu_custom_call.1} parent=1 // pred_check_branch
      %85 = sbr.rel (0) target = $region45
    $region44: #{tpu_custom_call.1} parent=1 // pred_region
      %87 = dma.done [#allocation9], 1024
    $region45: #{tpu_custom_call.1} parent=1 // pred_fallthru
      _
    %v89 = vld [vmem:[#allocation2] sm:$0xff]
    %v90 = vld [vmem:[#allocation5] sm:$0xf]
    %v91 = vld [vmem:[#allocation5 + $0x4] sm:$0xf]
    %v92 = vld [vmem:[#allocation5 + $0x8] sm:$0xf]
    %v93 = vld [vmem:[#allocation5 + $0xc] sm:$0xf]
    %v94 = vld [vmem:[%s2] sm:$0x1]
    %v95 = vpack.c.bf16 %v89, %v89
    %v97 = vperm.slane %v94, 0
    %v103 = vunpack.c.l.b16 %v90
    %v104 = vunpack.c.l.b16 %v91
    %v105 = vunpack.c.l.b16 %v92
    %v106 = vunpack.c.l.b16 %v93
    %v107 = vpack.c.b16 %v104, %v103
    %v108 = vpack.c.b16 %v106, %v105
    %vm111 = vcmask 261120
    %v113 = vsel %vm111, %v95, 0
    %115 = vmatpush.bf16.msra.mxu0 0
    %116 = vmatpush.bf16.msra.mxu0 0
    %117 = vmatpush.bf16.msra.mxu0 0
    %118 = vmatpush.bf16.msra.mxu0 0
    %119 = vmatpush.bf16.msra.mxu0 0
    %120 = vmatpush.bf16.msra.mxu0 0
    %121 = vmatpush.bf16.msra.mxu0 %v108
    %122 = vmatpush.bf16.msra.mxu0 %v107
    %123 = vmatmul.bf16.gmra.mxu0 %v113
    %v124 = vpop.f32.mrf.mxu0
    %v125 = vadd.f32 %v97, %v124
    %v126 = vpop.f32.mrf.mxu0
    %127 = vdwg.mxu0
    %v128 = vmax.f32 %v125, 0.0
    %v129 = vld [vmem:[#allocation7] sm:$0xf]
    %v130 = vld [vmem:[#allocation7 + $0x4] sm:$0xf]
    %v131 = vld [vmem:[#allocation7 + $0x8] sm:$0xf]
    %v132 = vld [vmem:[#allocation7 + $0xc] sm:$0xf]
    %v133 = vld [vmem:[#allocation7 + $0x10] sm:$0xf]
    %v134 = vld [vmem:[#allocation7 + $0x14] sm:$0xf]
    %v135 = vld [vmem:[#allocation7 + $0x18] sm:$0xf]
    %v136 = vld [vmem:[#allocation7 + $0x1c] sm:$0xf]
    %v137 = vld [vmem:[#allocation7 + $0x20] sm:$0xf]
    %v138 = vld [vmem:[#allocation7 + $0x24] sm:$0xf]
    %v139 = vld [vmem:[#allocation7 + $0x28] sm:$0xf]
    %v140 = vld [vmem:[#allocation7 + $0x2c] sm:$0xf]
    %v141 = vld [vmem:[#allocation7 + $0x30] sm:$0xf]
    %v142 = vld [vmem:[#allocation7 + $0x34] sm:$0xf]
    %v143 = vld [vmem:[#allocation7 + $0x38] sm:$0xf]
    %v144 = vld [vmem:[#allocation7 + $0x3c] sm:$0xf]
    %v145 = vld [vmem:[%s4] sm:$0x1]
    %v146 = vpack.c.bf16 %v128, %v128
    %v148 = vperm.slane %v145, 0
    %v166 = vunpack.c.l.b16 %v129
    %v167 = vunpack.c.l.b16 %v130
    %v168 = vunpack.c.l.b16 %v131
    %v169 = vunpack.c.l.b16 %v132
    %v170 = vunpack.c.l.b16 %v133
    %v171 = vunpack.c.l.b16 %v134
    %v172 = vunpack.c.l.b16 %v135
    %v173 = vunpack.c.l.b16 %v136
    %v174 = vunpack.c.l.b16 %v137
    %v175 = vunpack.c.l.b16 %v138
    %v176 = vunpack.c.l.b16 %v139
    %v177 = vunpack.c.l.b16 %v140
    %v178 = vunpack.c.l.b16 %v141
    %v179 = vunpack.c.l.b16 %v142
    %v180 = vunpack.c.l.b16 %v143
    %v181 = vunpack.c.l.b16 %v144
    %v182 = vpack.c.b16 %v167, %v166
    %v183 = vpack.c.b16 %v169, %v168
    %v184 = vpack.c.b16 %v171, %v170
    %v185 = vpack.c.b16 %v173, %v172
    %v186 = vpack.c.b16 %v175, %v174
    %v187 = vpack.c.b16 %v177, %v176
    %v188 = vpack.c.b16 %v179, %v178
    %v189 = vpack.c.b16 %v181, %v180
    %198 = vmatpush.bf16.msra.mxu0 %v189
    %199 = vmatpush.bf16.msra.mxu0 %v188
    %200 = vmatpush.bf16.msra.mxu0 %v187
    %201 = vmatpush.bf16.msra.mxu0 %v186
    %202 = vmatpush.bf16.msra.mxu0 %v185
    %203 = vmatpush.bf16.msra.mxu0 %v184
    %204 = vmatpush.bf16.msra.mxu0 %v183
    %205 = vmatpush.bf16.msra.mxu0 %v182
    %206 = vmatmul.bf16.gmra.mxu0 %v146
    %v207 = vpop.f32.mrf.mxu0
    %v208 = vadd.f32 %v148, %v207
    %v209 = vpop.f32.mrf.mxu0
    %210 = vdwg.mxu0
    %v211 = vmax.f32 %v208, 0.0
    %v212 = vld [vmem:[#allocation8] sm:$0xf]
    %v213 = vld [vmem:[#allocation8 + $0x4] sm:$0xf]
    %v214 = vld [vmem:[#allocation8 + $0x8] sm:$0xf]
    %v215 = vld [vmem:[#allocation8 + $0xc] sm:$0xf]
    %v216 = vld [vmem:[#allocation8 + $0x10] sm:$0xf]
    %v217 = vld [vmem:[#allocation8 + $0x14] sm:$0xf]
    %v218 = vld [vmem:[#allocation8 + $0x18] sm:$0xf]
    %v219 = vld [vmem:[#allocation8 + $0x1c] sm:$0xf]
    %v220 = vld [vmem:[#allocation8 + $0x20] sm:$0xf]
    %v221 = vld [vmem:[#allocation8 + $0x24] sm:$0xf]
    %v222 = vld [vmem:[#allocation8 + $0x28] sm:$0xf]
    %v223 = vld [vmem:[#allocation8 + $0x2c] sm:$0xf]
    %v224 = vld [vmem:[#allocation8 + $0x30] sm:$0xf]
    %v225 = vld [vmem:[#allocation8 + $0x34] sm:$0xf]
    %v226 = vld [vmem:[#allocation8 + $0x38] sm:$0xf]
    %v227 = vld [vmem:[#allocation8 + $0x3c] sm:$0xf]
    %v228 = vld [vmem:[%s6] sm:$0x1]
    %v229 = vpack.c.bf16 %v211, %v211
    %v231 = vperm.slane %v228, 0
    %v249 = vunpack.c.l.b16 %v212
    %v250 = vunpack.c.l.b16 %v213
    %v251 = vunpack.c.l.b16 %v214
    %v252 = vunpack.c.l.b16 %v215
    %v253 = vunpack.c.l.b16 %v216
    %v254 = vunpack.c.l.b16 %v217
    %v255 = vunpack.c.l.b16 %v218
    %v256 = vunpack.c.l.b16 %v219
    %v257 = vunpack.c.l.b16 %v220
    %v258 = vunpack.c.l.b16 %v221
    %v259 = vunpack.c.l.b16 %v222
    %v260 = vunpack.c.l.b16 %v223
    %v261 = vunpack.c.l.b16 %v224
    %v262 = vunpack.c.l.b16 %v225
    %v263 = vunpack.c.l.b16 %v226
    %v264 = vunpack.c.l.b16 %v227
    %v265 = vpack.c.b16 %v250, %v249
    %v266 = vpack.c.b16 %v252, %v251
    %v267 = vpack.c.b16 %v254, %v253
    %v268 = vpack.c.b16 %v256, %v255
    %v269 = vpack.c.b16 %v258, %v257
    %v270 = vpack.c.b16 %v260, %v259
    %v271 = vpack.c.b16 %v262, %v261
    %v272 = vpack.c.b16 %v264, %v263
    %281 = vmatpush.bf16.msra.mxu0 %v272
    %282 = vmatpush.bf16.msra.mxu0 %v271
    %283 = vmatpush.bf16.msra.mxu0 %v270
    %284 = vmatpush.bf16.msra.mxu0 %v269
    %285 = vmatpush.bf16.msra.mxu0 %v268
    %286 = vmatpush.bf16.msra.mxu0 %v267
    %287 = vmatpush.bf16.msra.mxu0 %v266
    %288 = vmatpush.bf16.msra.mxu0 %v265
    %289 = vmatmul.bf16.gmra.mxu0 %v229
    %v290 = vpop.f32.mrf.mxu0
    %v291 = vadd.f32 %v231, %v290
    %v292 = vpop.f32.mrf.mxu0
    %293 = vdwg.mxu0
    %294 = vst [vmem:[#allocation10] sm:$0xff] %v291
    // Predicated region
    $region46: #{tpu_custom_call.1} parent=1 // pred_check
      _
    $region47: #{tpu_custom_call.1} parent=1 // pred_check_branch
      %296 = sbr.rel (0) target = $region49
    $region48: #{tpu_custom_call.1} parent=1 // pred_region
      %298 = vsyncadd [#allocation4], 0
      %s300 = sshll.u32 [#allocation10], 4
      %s301 = int_to_ptr.vmem [resolvable:$true] %s300
      %s302 = sshll.u32 %s7, 4
      %s303 = int_to_ptr.hbm [resolvable:$true] %s302
      %305 = dma.vmem_to_hbm [thread:$0]  %s301, 128, %s303, [#allocation4]
    $region49: #{tpu_custom_call.1} parent=1 // pred_fallthru
      _
    // Predicated region
    $region50: #{tpu_custom_call.1} parent=1 // pred_check
      _
    $region51: #{tpu_custom_call.1} parent=1 // pred_check_branch
      %307 = sbr.rel (0) target = $region53
    $region52: #{tpu_custom_call.1} parent=1 // pred_region
      %309 = dma.done [#allocation4], 128
    $region53: #{tpu_custom_call.1} parent=1 // pred_fallthru
      _
    %310 = vsyncpa [#allocation3], 1
    %311 = vsyncpa [#allocation6], 1
    %312 = vsyncpa [#allocation9], 1
    %313 = vsyncpa [#allocation4], 1

</llo_original>
